<compile_context>
chip_gen: v5e
topology: v5e:2x2
jax: 0.10.0
libtpu: 0.0.40
codegen_flags: <defaults>
</compile_context>

<pallas_src>
import functools

import jax
import jax.numpy as jnp
from jax import lax
from jax.experimental import pallas as pl
from jax.experimental.pallas import tpu as pltpu

BN_EPS = 1e-5


# ---------------------------------------------------------------------------
# Generation-aware VMEM budget (review: a fixed 48 MiB cap is sized for v7x
# and wastes half of v5e/v6e's 128 MiB).
# ---------------------------------------------------------------------------
@functools.lru_cache(maxsize=None)
def _vmem_limit_bytes():
    cap = 64 * 1024 * 1024                      # conservative fallback (v7x)
    try:
        info = pltpu.get_tpu_info()
        v = getattr(info, "vmem_capacity_bytes", None)
        if v:
            cap = int(v)
    except Exception:
        pass
    # ~3/4 of physical: ~96 MiB on v5e/v6e (128 MiB), ~48 MiB on v7x (64 MiB).
    return min(int(cap * 3 // 4), 100 * 1024 * 1024)


def _proj_tile(BT, C, vmem_limit):
    """Row-tile for kernel 1: biggest candidate that divides BT and fits VMEM."""
    def est(tm):
        # double-buffered x tile + 3 double-buffered bf16 output tiles
        # + (double-buffered) resident weights/biases.
        return (2 * tm * C * 2) + (3 * 2 * tm * C * 2) + 2 * (3 * C * C * 2 + 3 * C * 4)
    for tm in (1024, 512, 256, 128):
        if BT % tm == 0 and est(tm) <= vmem_limit:
            return tm
    # TODO(synk): for C >= ~2048 on v7x the resident (C,C) weights dominate;
    # add an N-tiling grid axis / Buffered(1) weight specs instead of shrinking tm.
    for tm in (128, 64, 32, 16, 8):
        if BT % tm == 0:
            return tm
    return BT


def _flash_tiles(T, C, vmem_limit):
    """(tq, tk) for kernel 2: prefer 512 (review items 2/3), shrink to fit VMEM."""
    divs = [c for c in (512, 256, 128) if T % c == 0]
    if not divs:
        small = [c for c in (64, 32, 16, 8) if T % c == 0]
        t = small[0] if small else T
        return t, t

    def est(tq, tk):
        io = 2 * (tq * C * 2 + 2 * (tk * C * 2) + C * tq * 4 + C * tq * 4)  # q,k,v,x,out
        w = 2 * (C * C * 2 + 2 * C * 4)                                     # wo,bo,scale
        sc = tq * C * 4 + 2 * tq * 4                                        # acc,m,l
        tmp = 4 * tq * tk * 4                                               # s/p temporaries
        return io + w + sc + tmp

    tq = tk = divs[0]
    iq = ik = 0
    while est(tq, tk) > vmem_limit:
        if ik + 1 < len(divs):
            ik += 1
            tk = divs[ik]
        elif iq + 1 < len(divs):
            iq += 1
            tq = divs[iq]
        else:
            break
    return tq, tk


# ---------------------------------------------------------------------------
# Kernel 1: fused QKV projection, three separate lane-dense outputs.
#   x:        (tm, C)  bf16   (rows = folded batch*time)
#   wq/wk/wv: (C, C)   bf16   (pre-transposed; q pre-scaled by 1/sqrt(C))
#   bq/bk/bv: (1, C)   f32
#   q/k/v:    (tm, C)  bf16
# ---------------------------------------------------------------------------
def _qkv_proj_kernel(x_ref, wq_ref, wk_ref, wv_ref, bq_ref, bk_ref, bv_ref,
                     q_ref, k_ref, v_ref):
    x = x_ref[...]
    q_ref[...] = (jnp.dot(x, wq_ref[...], preferred_element_type=jnp.float32)
                  + bq_ref[...]).astype(q_ref.dtype)
    k_ref[...] = (jnp.dot(x, wk_ref[...], preferred_element_type=jnp.float32)
                  + bk_ref[...]).astype(k_ref.dtype)
    v_ref[...] = (jnp.dot(x, wv_ref[...], preferred_element_type=jnp.float32)
                  + bv_ref[...]).astype(v_ref.dtype)


def _qkv_projection(x_flat, wq_t, wk_t, wv_t, bq, bk, bv, vmem_limit):
    BT, C = x_flat.shape
    tm = _proj_tile(BT, C, vmem_limit)
    row_spec = pl.BlockSpec((tm, C), lambda i: (i, 0))
    w_spec = pl.BlockSpec((C, C), lambda i: (0, 0))
    b_spec = pl.BlockSpec((1, C), lambda i: (0, 0))
    out_sds = jax.ShapeDtypeStruct((BT, C), jnp.bfloat16)
    return pl.pallas_call(
        _qkv_proj_kernel,
        out_shape=(out_sds, out_sds, out_sds),
        grid=(BT // tm,),
        in_specs=[row_spec, w_spec, w_spec, w_spec, b_spec, b_spec, b_spec],
        out_specs=(row_spec, row_spec, row_spec),
        compiler_params=pltpu.CompilerParams(
            dimension_semantics=("parallel",),
            vmem_limit_bytes=vmem_limit),
    )(x_flat, wq_t, wk_t, wv_t, bq, bk, bv)


# ---------------------------------------------------------------------------
# Kernel 2: flash attention + out-projection + residual + BatchNorm epilogue.
#   q      : (1, tq, C) bf16     (pre-scaled by 1/sqrt(C))
#   k, v   : (1, tk, C) bf16
#   x      : (1, C, tq) f32      residual, native (B, C, T) layout
#   wo     : (C, C)     bf16     original (out,in) orientation, BN scale folded
#   bo     : (C, 1)     f32      bo*bn_scale + bn_shift
#   scale  : (C, 1)     f32      bn_scale (residual term)
#   out    : (1, C, tq) f32      written directly in (B, C, T) layout
# ---------------------------------------------------------------------------
def _flash_attn_kernel(q_ref, k_ref, v_ref, x_ref, wo_ref, bo_ref, scale_ref,
                       o_ref, m_sc, l_sc, acc_sc):
    kv = pl.program_id(2)

    @pl.when(kv == 0)
    def _():
        m_sc[...] = jnp.full_like(m_sc, -jnp.inf)
        l_sc[...] = jnp.zeros_like(l_sc)
        acc_sc[...] = jnp.zeros_like(acc_sc)

    q = q_ref[0]                                   # (tq, C) bf16
    k = k_ref[0]                                   # (tk, C) bf16
    v = v_ref[0]                                   # (tk, C) bf16

    # Scores: contract the channel (lane) dim of q and k (standard NT flash
    # pattern; review item 7 kept as-is pending a bundle check).
    s = lax.dot_general(q, k, (((1,), (1,)), ((), ())),
                        preferred_element_type=jnp.float32)          # (tq, tk)

    # Online softmax (all f32).
    m_prev = m_sc[...]
    m_new = jnp.maximum(m_prev, jnp.max(s, axis=-1, keepdims=True))
    alpha = jnp.exp(m_prev - m_new)
    p = jnp.exp(s - m_new)
    l_sc[...] = alpha * l_sc[...] + jnp.sum(p, axis=-1, keepdims=True)
    acc_sc[...] = alpha * acc_sc[...] + jnp.dot(
        p.astype(v.dtype), v, preferred_element_type=jnp.float32)
    m_sc[...] = m_new

    @pl.when(kv == pl.num_programs(2) - 1)
    def _():
        inv_l = pl.reciprocal(l_sc[...], approx=True)                # EUP vrcp
        o = (acc_sc[...] * inv_l).astype(wo_ref.dtype)               # (tq, C) bf16
        # Out-projection emitted transposed:
        #   proj_t[oc, t] = sum_c wo_fold[oc, c] * o[t, c]   (NT matmul -> (C, tq))
        proj_t = lax.dot_general(wo_ref[...], o, (((1,), (1,)), ((), ())),
                                 preferred_element_type=jnp.float32)
        # Dropout is identity in eval mode; BN affine folded into wo/bo; the
        # residual (native (C, tq) slice of x) enters scaled by bn_scale.
        y = proj_t + bo_ref[...] + x_ref[0] * scale_ref[...]         # (C, tq) f32
        o_ref[0] = y.astype(o_ref.dtype)


@jax.jit
def attention_block(x, params):
    """x: (B, C, T) float32 -> (B, C, T). Eval-mode AttentionBlock forward."""
    B, C, T = x.shape
    f32 = jnp.float32
    vmem_limit = _vmem_limit_bytes()

    # ---- one-time folding (XLA side, outside the kernels) ------------------
    inv_sqrt_c = 1.0 / (C ** 0.5)
    bn_scale = params["gamma"] * lax.rsqrt(params["var"] + BN_EPS)     # (1, C)
    bn_shift = params["beta"] - params["mean"] * bn_scale              # (1, C)

    wq_t = (params["wq"].T * inv_sqrt_c).astype(jnp.bfloat16)          # (C, C)
    wk_t = params["wk"].T.astype(jnp.bfloat16)
    wv_t = params["wv"].T.astype(jnp.bfloat16)
    bq = (params["bq"] * inv_sqrt_c).astype(f32)                       # (1, C)
    bk = params["bk"].astype(f32)
    bv = params["bv"].astype(f32)

    # Out-proj weight in ORIGINAL (out, in) orientation, BN scale folded per
    # output channel; epilogue uses it as the NT lhs.
    wo_fold = (params["wo"] * bn_scale.T).astype(jnp.bfloat16)         # (C, C)
    bo_col = (params["bo"] * bn_scale + bn_shift).T.astype(f32)        # (C, 1)
    scale_col = bn_scale.T.astype(f32)                                 # (C, 1)

    # Only the kernel-1 input needs a lane-dense (BT, C) view; residual and
    # output stay in the module's native (B, C, T) layout.
    x_flat = jnp.transpose(x, (0, 2, 1)).reshape(B * T, C).astype(jnp.bfloat16)

    # ---- kernel 1: fused QKV projection (3 separate outputs) ---------------
    q_flat, k_flat, v_flat = _qkv_projection(
        x_flat, wq_t, wk_t, wv_t, bq, bk, bv, vmem_limit)
    q = q_flat.reshape(B, T, C)     # leading-dim split: free, no copy
    k = k_flat.reshape(B, T, C)
    v = v_flat.reshape(B, T, C)

    # ---- kernel 2: flash attention + fused epilogue -------------------------
    tq, tk = _flash_tiles(T, C, vmem_limit)
    grid = (B, T // tq, T // tk)     # kv (reduction) axis last

    out = pl.pallas_call(
        _flash_attn_kernel,
        out_shape=jax.ShapeDtypeStruct((B, C, T), x.dtype),
        grid=grid,
        in_specs=[
            pl.BlockSpec((1, tq, C), lambda b, qi, ki: (b, qi, 0)),   # q
            pl.BlockSpec((1, tk, C), lambda b, qi, ki: (b, ki, 0)),   # k
            pl.BlockSpec((1, tk, C), lambda b, qi, ki: (b, ki, 0)),   # v
            pl.BlockSpec((1, C, tq), lambda b, qi, ki: (b, 0, qi)),   # residual x
            pl.BlockSpec((C, C), lambda b, qi, ki: (0, 0)),           # wo_fold
            pl.BlockSpec((C, 1), lambda b, qi, ki: (0, 0)),           # bo_col
            pl.BlockSpec((C, 1), lambda b, qi, ki: (0, 0)),           # scale_col
        ],
        out_specs=pl.BlockSpec((1, C, tq), lambda b, qi, ki: (b, 0, qi)),
        scratch_shapes=[
            pltpu.VMEM((tq, 1), jnp.float32),   # running max
            pltpu.VMEM((tq, 1), jnp.float32),   # running sum
            pltpu.VMEM((tq, C), jnp.float32),   # output accumulator
        ],
        compiler_params=pltpu.CompilerParams(
            dimension_semantics=("parallel", "parallel", "arbitrary"),
            vmem_limit_bytes=vmem_limit),
    )(q, k, v, x, wo_fold, bo_col, scale_col)

    return out


# ---------------------------------------------------------------------------
# Pure-JAX reference mirroring the PyTorch module (eval mode), all f32.
# ---------------------------------------------------------------------------
def reference(x, params):
    C = x.shape[1]

    def conv1x1(z, w, b):  # z: (B,C,T), w: (C,C), b: (1,C)
        return jnp.einsum("oc,bct->bot", w, z) + b[0][None, :, None]

    q = conv1x1(x, params["wq"], params["bq"])
    k = conv1x1(x, params["wk"], params["bk"])
    v = conv1x1(x, params["wv"], params["bv"])

    attn = jax.nn.softmax(
        jnp.einsum("bct,bcs->bts", q, k) / (C ** 0.5), axis=-1)
    out = jnp.einsum("bts,bcs->btc", attn, v)                 # (B,T,C)
    out = conv1x1(jnp.transpose(out, (0, 2, 1)), params["wo"], params["bo"])
    y = out + x                                               # (B,C,T)

    g = params["gamma"][0][None, :, None]
    bta = params["beta"][0][None, :, None]
    m = params["mean"][0][None, :, None]
    vv = params["var"][0][None, :, None]
    return g * (y - m) / jnp.sqrt(vv + BN_EPS) + bta


def init_params(key, C):
    ks = jax.random.split(key, 12)
    s = 1.0 / (C ** 0.5)
    return {
        "wq": jax.random.uniform(ks[0], (C, C), jnp.float32, -s, s),
        "bq": jax.random.uniform(ks[1], (1, C), jnp.float32, -s, s),
        "wk": jax.random.uniform(ks[2], (C, C), jnp.float32, -s, s),
        "bk": jax.random.uniform(ks[3], (1, C), jnp.float32, -s, s),
        "wv": jax.random.uniform(ks[4], (C, C), jnp.float32, -s, s),
        "bv": jax.random.uniform(ks[5], (1, C), jnp.float32, -s, s),
        "wo": jax.random.uniform(ks[6], (C, C), jnp.float32, -s, s),
        "bo": jax.random.uniform(ks[7], (1, C), jnp.float32, -s, s),
        "gamma": 1.0 + 0.1 * jax.random.normal(ks[8], (1, C), jnp.float32),
        "beta": 0.1 * jax.random.normal(ks[9], (1, C), jnp.float32),
        "mean": 0.1 * jax.random.normal(ks[10], (1, C), jnp.float32),
        "var": 0.5 + jnp.abs(jax.random.normal(ks[11], (1, C), jnp.float32)),
    }


if __name__ == "__main__":
    # TODO(synk): Dropout / BatchNorm are implemented in eval mode (identity /
    # running statistics); train-mode RNG masking and batch stats are not done.
    def check(B, C, T, key):
        kx, kp = jax.random.split(key)
        x = jax.random.normal(kx, (B, C, T), jnp.float32)
        params = init_params(kp, C)
        out = jax.block_until_ready(attention_block(x, params))
        ref = reference(x, params)
        assert out.shape == (B, C, T)
        err = float(jnp.max(jnp.abs(out - ref)))
        # bf16 MXU operands with f32 accumulation vs. an all-f32 reference.
        assert jnp.allclose(out, ref, atol=5e-2, rtol=5e-2), (B, C, T, err)

    k1, k2 = jax.random.split(jax.random.PRNGKey(0))
    check(2, 4, 16, k1)        # small spec-sized shape (full-extent blocks)
    check(2, 128, 1024, k2)    # lane-aligned shape: multi-tile grid + kv-revisit path
    print("KERNEL_OK")
</pallas_src>

<mosaic_0001>
module attributes {stable_mosaic.version = 11 : i64} {
  func.func @_qkv_proj_kernel(%arg0: i32, %arg1: memref<32x4xbf16, #tpu.memory_space<vmem>>, %arg2: memref<4x4xbf16, #tpu.memory_space<vmem>>, %arg3: memref<4x4xbf16, #tpu.memory_space<vmem>>, %arg4: memref<4x4xbf16, #tpu.memory_space<vmem>>, %arg5: memref<1x4xf32, #tpu.memory_space<vmem>>, %arg6: memref<1x4xf32, #tpu.memory_space<vmem>>, %arg7: memref<1x4xf32, #tpu.memory_space<vmem>>, %arg8: memref<32x4xbf16, #tpu.memory_space<vmem>>, %arg9: memref<32x4xbf16, #tpu.memory_space<vmem>>, %arg10: memref<32x4xbf16, #tpu.memory_space<vmem>>) attributes {dimension_semantics = [#tpu.dimension_semantics<parallel>], iteration_bounds = array<i64: 1>, scalar_prefetch = 0 : i64, scratch_operands = 0 : i64, tpu.core_type = #tpu.core_type<tc>, window_params = [{transform_indices = @transform_0, window_bounds = array<i64: 32, 4>}, {pipeline_mode = #tpu.pipeline_mode<synchronous>, transform_indices = @transform_1, window_bounds = array<i64: 4, 4>}, {pipeline_mode = #tpu.pipeline_mode<synchronous>, transform_indices = @transform_2, window_bounds = array<i64: 4, 4>}, {pipeline_mode = #tpu.pipeline_mode<synchronous>, transform_indices = @transform_3, window_bounds = array<i64: 4, 4>}, {pipeline_mode = #tpu.pipeline_mode<synchronous>, transform_indices = @transform_4, window_bounds = array<i64: 1, 4>}, {pipeline_mode = #tpu.pipeline_mode<synchronous>, transform_indices = @transform_5, window_bounds = array<i64: 1, 4>}, {pipeline_mode = #tpu.pipeline_mode<synchronous>, transform_indices = @transform_6, window_bounds = array<i64: 1, 4>}, {transform_indices = @transform_7, window_bounds = array<i64: 32, 4>}, {transform_indices = @transform_8, window_bounds = array<i64: 32, 4>}, {transform_indices = @transform_9, window_bounds = array<i64: 32, 4>}]} {
    %c0 = arith.constant 0 : index
    %c0_0 = arith.constant 0 : index
    %0 = vector.load %arg1[%c0, %c0_0] : memref<32x4xbf16, #tpu.memory_space<vmem>>, vector<32x4xbf16>
    %c0_1 = arith.constant 0 : index
    %c0_2 = arith.constant 0 : index
    %1 = vector.load %arg2[%c0_1, %c0_2] : memref<4x4xbf16, #tpu.memory_space<vmem>>, vector<4x4xbf16>
    %cst = arith.constant dense<0.000000e+00> : vector<32x4xf32>
    %2 = tpu.matmul %0, %1, %cst {dimension_numbers = #tpu.dot_dimension_numbers<[1], [0], [0], [1], [0, 0, 1, 1], [], []>} : vector<32x4xbf16>, vector<4x4xbf16>, vector<32x4xf32> -> vector<32x4xf32>
    %c0_3 = arith.constant 0 : index
    %c0_4 = arith.constant 0 : index
    %3 = vector.load %arg5[%c0_3, %c0_4] : memref<1x4xf32, #tpu.memory_space<vmem>>, vector<1x4xf32>
    %4 = vector.broadcast %3 : vector<1x4xf32> to vector<32x4xf32>
    %5 = arith.addf %2, %4 : vector<32x4xf32>
    %6 = arith.truncf %5 : vector<32x4xf32> to vector<32x4xbf16>
    %c0_5 = arith.constant 0 : index
    %c0_6 = arith.constant 0 : index
    %7 = vector.load %arg8[%c0_5, %c0_6] : memref<32x4xbf16, #tpu.memory_space<vmem>>, vector<32x4xbf16>
    tpu.vector_store %arg8[%c0_5, %c0_6], %6 {strides = array<i32>} : memref<32x4xbf16, #tpu.memory_space<vmem>>, vector<32x4xbf16>,
    %c0_7 = arith.constant 0 : index
    %c0_8 = arith.constant 0 : index
    %8 = vector.load %arg3[%c0_7, %c0_8] : memref<4x4xbf16, #tpu.memory_space<vmem>>, vector<4x4xbf16>
    %cst_9 = arith.constant dense<0.000000e+00> : vector<32x4xf32>
    %9 = tpu.matmul %0, %8, %cst_9 {dimension_numbers = #tpu.dot_dimension_numbers<[1], [0], [0], [1], [0, 0, 1, 1], [], []>} : vector<32x4xbf16>, vector<4x4xbf16>, vector<32x4xf32> -> vector<32x4xf32>
    %c0_10 = arith.constant 0 : index
    %c0_11 = arith.constant 0 : index
    %10 = vector.load %arg6[%c0_10, %c0_11] : memref<1x4xf32, #tpu.memory_space<vmem>>, vector<1x4xf32>
    %11 = vector.broadcast %10 : vector<1x4xf32> to vector<32x4xf32>
    %12 = arith.addf %9, %11 : vector<32x4xf32>
    %13 = arith.truncf %12 : vector<32x4xf32> to vector<32x4xbf16>
    %c0_12 = arith.constant 0 : index
    %c0_13 = arith.constant 0 : index
    %14 = vector.load %arg9[%c0_12, %c0_13] : memref<32x4xbf16, #tpu.memory_space<vmem>>, vector<32x4xbf16>
    tpu.vector_store %arg9[%c0_12, %c0_13], %13 {strides = array<i32>} : memref<32x4xbf16, #tpu.memory_space<vmem>>, vector<32x4xbf16>,
    %c0_14 = arith.constant 0 : index
    %c0_15 = arith.constant 0 : index
    %15 = vector.load %arg4[%c0_14, %c0_15] : memref<4x4xbf16, #tpu.memory_space<vmem>>, vector<4x4xbf16>
    %cst_16 = arith.constant dense<0.000000e+00> : vector<32x4xf32>
    %16 = tpu.matmul %0, %15, %cst_16 {dimension_numbers = #tpu.dot_dimension_numbers<[1], [0], [0], [1], [0, 0, 1, 1], [], []>} : vector<32x4xbf16>, vector<4x4xbf16>, vector<32x4xf32> -> vector<32x4xf32>
    %c0_17 = arith.constant 0 : index
    %c0_18 = arith.constant 0 : index
    %17 = vector.load %arg7[%c0_17, %c0_18] : memref<1x4xf32, #tpu.memory_space<vmem>>, vector<1x4xf32>
    %18 = vector.broadcast %17 : vector<1x4xf32> to vector<32x4xf32>
    %19 = arith.addf %16, %18 : vector<32x4xf32>
    %20 = arith.truncf %19 : vector<32x4xf32> to vector<32x4xbf16>
    %c0_19 = arith.constant 0 : index
    %c0_20 = arith.constant 0 : index
    %21 = vector.load %arg10[%c0_19, %c0_20] : memref<32x4xbf16, #tpu.memory_space<vmem>>, vector<32x4xbf16>
    tpu.vector_store %arg10[%c0_19, %c0_20], %20 {strides = array<i32>} : memref<32x4xbf16, #tpu.memory_space<vmem>>, vector<32x4xbf16>,
    return
  }
  func.func @transform_0(%arg0: i32) -> (i32, i32) {
    %c0_i32 = arith.constant 0 : i32
    %c0_i32_0 = arith.constant 0 : i32
    return %arg0, %c0_i32 : i32, i32
  }
  func.func @transform_1(%arg0: i32) -> (i32, i32) {
    %c0_i32 = arith.constant 0 : i32
    %c0_i32_0 = arith.constant 0 : i32
    %c0_i32_1 = arith.constant 0 : i32
    return %c0_i32, %c0_i32_0 : i32, i32
  }
  func.func @transform_2(%arg0: i32) -> (i32, i32) {
    %c0_i32 = arith.constant 0 : i32
    %c0_i32_0 = arith.constant 0 : i32
    %c0_i32_1 = arith.constant 0 : i32
    return %c0_i32, %c0_i32_0 : i32, i32
  }
  func.func @transform_3(%arg0: i32) -> (i32, i32) {
    %c0_i32 = arith.constant 0 : i32
    %c0_i32_0 = arith.constant 0 : i32
    %c0_i32_1 = arith.constant 0 : i32
    return %c0_i32, %c0_i32_0 : i32, i32
  }
  func.func @transform_4(%arg0: i32) -> (i32, i32) {
    %c0_i32 = arith.constant 0 : i32
    %c0_i32_0 = arith.constant 0 : i32
    %c0_i32_1 = arith.constant 0 : i32
    return %c0_i32, %c0_i32_0 : i32, i32
  }
  func.func @transform_5(%arg0: i32) -> (i32, i32) {
    %c0_i32 = arith.constant 0 : i32
    %c0_i32_0 = arith.constant 0 : i32
    %c0_i32_1 = arith.constant 0 : i32
    return %c0_i32, %c0_i32_0 : i32, i32
  }
  func.func @transform_6(%arg0: i32) -> (i32, i32) {
    %c0_i32 = arith.constant 0 : i32
    %c0_i32_0 = arith.constant 0 : i32
    %c0_i32_1 = arith.constant 0 : i32
    return %c0_i32, %c0_i32_0 : i32, i32
  }
  func.func @transform_7(%arg0: i32) -> (i32, i32) {
    %c0_i32 = arith.constant 0 : i32
    %c0_i32_0 = arith.constant 0 : i32
    return %arg0, %c0_i32 : i32, i32
  }
  func.func @transform_8(%arg0: i32) -> (i32, i32) {
    %c0_i32 = arith.constant 0 : i32
    %c0_i32_0 = arith.constant 0 : i32
    return %arg0, %c0_i32 : i32, i32
  }
  func.func @transform_9(%arg0: i32) -> (i32, i32) {
    %c0_i32 = arith.constant 0 : i32
    %c0_i32_0 = arith.constant 0 : i32
    return %arg0, %c0_i32 : i32, i32
  }
}

module attributes {stable_mosaic.version = 11 : i64} {
  func.func @_flash_attn_kernel(%arg0: i32, %arg1: i32, %arg2: i32, %arg3: memref<1x16x4xbf16, #tpu.memory_space<vmem>>, %arg4: memref<1x16x4xbf16, #tpu.memory_space<vmem>>, %arg5: memref<1x16x4xbf16, #tpu.memory_space<vmem>>, %arg6: memref<1x4x16xf32, #tpu.memory_space<vmem>>, %arg7: memref<4x4xbf16, #tpu.memory_space<vmem>>, %arg8: memref<4x1xf32, #tpu.memory_space<vmem>>, %arg9: memref<4x1xf32, #tpu.memory_space<vmem>>, %arg10: memref<1x4x16xf32, #tpu.memory_space<vmem>>, %arg11: memref<16x1xf32, #tpu.memory_space<vmem>>, %arg12: memref<16x1xf32, #tpu.memory_space<vmem>>, %arg13: memref<16x4xf32, #tpu.memory_space<vmem>>) attributes {dimension_semantics = [#tpu.dimension_semantics<parallel>, #tpu.dimension_semantics<parallel>, #tpu.dimension_semantics<arbitrary>], iteration_bounds = array<i64: 2, 1, 1>, scalar_prefetch = 0 : i64, scratch_operands = 3 : i64, tpu.core_type = #tpu.core_type<tc>, window_params = [{transform_indices = @transform_0, window_bounds = array<i64: 1, 16, 4>}, {transform_indices = @transform_1, window_bounds = array<i64: 1, 16, 4>}, {transform_indices = @transform_2, window_bounds = array<i64: 1, 16, 4>}, {transform_indices = @transform_3, window_bounds = array<i64: 1, 4, 16>}, {pipeline_mode = #tpu.pipeline_mode<synchronous>, transform_indices = @transform_4, window_bounds = array<i64: 4, 4>}, {pipeline_mode = #tpu.pipeline_mode<synchronous>, transform_indices = @transform_5, window_bounds = array<i64: 4, 1>}, {pipeline_mode = #tpu.pipeline_mode<synchronous>, transform_indices = @transform_6, window_bounds = array<i64: 4, 1>}, {transform_indices = @transform_7, window_bounds = array<i64: 1, 4, 16>}]} {
    %c0_i32 = arith.constant 0 : i32
    %0 = arith.cmpi eq, %arg2, %c0_i32 : i32
    %1 = arith.extui %0 : i1 to i32
    %c0_i32_0 = arith.constant 0 : i32
    %2 = arith.cmpi ne, %1, %c0_i32_0 : i32
    scf.if %2 {
      %cst_26 = arith.constant 0xFF800000 : f32
      %36 = vector.broadcast %cst_26 : f32 to vector<16x1xf32>
      %c0_27 = arith.constant 0 : index
      %c0_28 = arith.constant 0 : index
      %37 = vector.load %arg11[%c0_27, %c0_28] : memref<16x1xf32, #tpu.memory_space<vmem>>, vector<16x1xf32>
      tpu.vector_store %arg11[%c0_27, %c0_28], %36 {strides = array<i32>} : memref<16x1xf32, #tpu.memory_space<vmem>>, vector<16x1xf32>,
      %cst_29 = arith.constant 0.000000e+00 : f32
      %38 = vector.broadcast %cst_29 : f32 to vector<16x1xf32>
      %c0_30 = arith.constant 0 : index
      %c0_31 = arith.constant 0 : index
      %39 = vector.load %arg12[%c0_30, %c0_31] : memref<16x1xf32, #tpu.memory_space<vmem>>, vector<16x1xf32>
      tpu.vector_store %arg12[%c0_30, %c0_31], %38 {strides = array<i32>} : memref<16x1xf32, #tpu.memory_space<vmem>>, vector<16x1xf32>,
      %cst_32 = arith.constant 0.000000e+00 : f32
      %40 = vector.broadcast %cst_32 : f32 to vector<16x4xf32>
      %c0_33 = arith.constant 0 : index
      %c0_34 = arith.constant 0 : index
      %41 = vector.load %arg13[%c0_33, %c0_34] : memref<16x4xf32, #tpu.memory_space<vmem>>, vector<16x4xf32>
      tpu.vector_store %arg13[%c0_33, %c0_34], %40 {strides = array<i32>} : memref<16x4xf32, #tpu.memory_space<vmem>>, vector<16x4xf32>,
    } else {
    }
    %c0 = arith.constant 0 : index
    %c0_1 = arith.constant 0 : index
    %c0_2 = arith.constant 0 : index
    %3 = vector.load %arg3[%c0, %c0_1, %c0_2] : memref<1x16x4xbf16, #tpu.memory_space<vmem>>, vector<1x16x4xbf16>
    %4 = vector.shape_cast %3 : vector<1x16x4xbf16> to vector<16x4xbf16>
    %c0_3 = arith.constant 0 : index
    %c0_4 = arith.constant 0 : index
    %c0_5 = arith.constant 0 : index
    %5 = vector.load %arg4[%c0_3, %c0_4, %c0_5] : memref<1x16x4xbf16, #tpu.memory_space<vmem>>, vector<1x16x4xbf16>
    %6 = vector.shape_cast %5 : vector<1x16x4xbf16> to vector<16x4xbf16>
    %c0_6 = arith.constant 0 : index
    %c0_7 = arith.constant 0 : index
    %c0_8 = arith.constant 0 : index
    %7 = vector.load %arg5[%c0_6, %c0_7, %c0_8] : memref<1x16x4xbf16, #tpu.memory_space<vmem>>, vector<1x16x4xbf16>
    %8 = vector.shape_cast %7 : vector<1x16x4xbf16> to vector<16x4xbf16>
    %cst = arith.constant dense<0.000000e+00> : vector<16x16xf32>
    %9 = tpu.matmul %4, %6, %cst {dimension_numbers = #tpu.dot_dimension_numbers<[1], [1], [0], [0], [0, 0, 1, 0], [], []>} : vector<16x4xbf16>, vector<16x4xbf16>, vector<16x16xf32> -> vector<16x16xf32>
    %c0_9 = arith.constant 0 : index
    %c0_10 = arith.constant 0 : index
    %10 = vector.load %arg11[%c0_9, %c0_10] : memref<16x1xf32, #tpu.memory_space<vmem>>, vector<16x1xf32>
    %cst_11 = arith.constant dense<0xFF800000> : vector<16xf32>
    %11 = vector.multi_reduction <maximumf>, %9, %cst_11 [1] : vector<16x16xf32> to vector<16xf32>
    %12 = vector.shape_cast %11 : vector<16xf32> to vector<16x1xf32>
    %13 = arith.maximumf %10, %12 : vector<16x1xf32>
    %14 = arith.subf %10, %13 : vector<16x1xf32>
    %15 = math.exp %14 : vector<16x1xf32>
    %16 = vector.broadcast %13 : vector<16x1xf32> to vector<16x16xf32>
    %17 = arith.subf %9, %16 : vector<16x16xf32>
    %18 = math.exp %17 : vector<16x16xf32>
    %c0_12 = arith.constant 0 : index
    %c0_13 = arith.constant 0 : index
    %19 = vector.load %arg12[%c0_12, %c0_13] : memref<16x1xf32, #tpu.memory_space<vmem>>, vector<16x1xf32>
    %20 = arith.mulf %15, %19 : vector<16x1xf32>
    %cst_14 = arith.constant dense<0.000000e+00> : vector<16xf32>
    %21 = vector.multi_reduction <add>, %18, %cst_14 [1] : vector<16x16xf32> to vector<16xf32>
    %22 = vector.shape_cast %21 : vector<16xf32> to vector<16x1xf32>
    %23 = arith.addf %20, %22 : vector<16x1xf32>
    %c0_15 = arith.constant 0 : index
    %c0_16 = arith.constant 0 : index
    %24 = vector.load %arg12[%c0_15, %c0_16] : memref<16x1xf32, #tpu.memory_space<vmem>>, vector<16x1xf32>
    tpu.vector_store %arg12[%c0_15, %c0_16], %23 {strides = array<i32>} : memref<16x1xf32, #tpu.memory_space<vmem>>, vector<16x1xf32>,
    %c0_17 = arith.constant 0 : index
    %c0_18 = arith.constant 0 : index
    %25 = vector.load %arg13[%c0_17, %c0_18] : memref<16x4xf32, #tpu.memory_space<vmem>>, vector<16x4xf32>
    %26 = vector.broadcast %15 : vector<16x1xf32> to vector<16x4xf32>
    %27 = arith.mulf %26, %25 : vector<16x4xf32>
    %28 = arith.truncf %18 : vector<16x16xf32> to vector<16x16xbf16>
    %cst_19 = arith.constant dense<0.000000e+00> : vector<16x4xf32>
    %29 = tpu.matmul %28, %8, %cst_19 {dimension_numbers = #tpu.dot_dimension_numbers<[1], [0], [0], [1], [0, 0, 1, 1], [], []>} : vector<16x16xbf16>, vector<16x4xbf16>, vector<16x4xf32> -> vector<16x4xf32>
    %30 = arith.addf %27, %29 : vector<16x4xf32>
    %c0_20 = arith.constant 0 : index
    %c0_21 = arith.constant 0 : index
    %31 = vector.load %arg13[%c0_20, %c0_21] : memref<16x4xf32, #tpu.memory_space<vmem>>, vector<16x4xf32>
    tpu.vector_store %arg13[%c0_20, %c0_21], %30 {strides = array<i32>} : memref<16x4xf32, #tpu.memory_space<vmem>>, vector<16x4xf32>,
    %c0_22 = arith.constant 0 : index
    %c0_23 = arith.constant 0 : index
    %32 = vector.load %arg11[%c0_22, %c0_23] : memref<16x1xf32, #tpu.memory_space<vmem>>, vector<16x1xf32>
    tpu.vector_store %arg11[%c0_22, %c0_23], %13 {strides = array<i32>} : memref<16x1xf32, #tpu.memory_space<vmem>>, vector<16x1xf32>,
    %c0_i32_24 = arith.constant 0 : i32
    %33 = arith.cmpi eq, %arg2, %c0_i32_24 : i32
    %34 = arith.extui %33 : i1 to i32
    %c0_i32_25 = arith.constant 0 : i32
    %35 = arith.cmpi ne, %34, %c0_i32_25 : i32
    scf.if %35 {
      %c0_26 = arith.constant 0 : index
      %c0_27 = arith.constant 0 : index
      %36 = vector.load %arg12[%c0_26, %c0_27] : memref<16x1xf32, #tpu.memory_space<vmem>>, vector<16x1xf32>
      %37 = tpu.reciprocal %36 {approx = true} : vector<16x1xf32> -> vector<16x1xf32>
      %c0_28 = arith.constant 0 : index
      %c0_29 = arith.constant 0 : index
      %38 = vector.load %arg13[%c0_28, %c0_29] : memref<16x4xf32, #tpu.memory_space<vmem>>, vector<16x4xf32>
      %39 = vector.broadcast %37 : vector<16x1xf32> to vector<16x4xf32>
      %40 = arith.mulf %38, %39 : vector<16x4xf32>
      %41 = arith.truncf %40 : vector<16x4xf32> to vector<16x4xbf16>
      %c0_30 = arith.constant 0 : index
      %c0_31 = arith.constant 0 : index
      %42 = vector.load %arg7[%c0_30, %c0_31] : memref<4x4xbf16, #tpu.memory_space<vmem>>, vector<4x4xbf16>
      %cst_32 = arith.constant dense<0.000000e+00> : vector<4x16xf32>
      %43 = tpu.matmul %42, %41, %cst_32 {dimension_numbers = #tpu.dot_dimension_numbers<[1], [1], [0], [0], [0, 0, 1, 0], [], []>} : vector<4x4xbf16>, vector<16x4xbf16>, vector<4x16xf32> -> vector<4x16xf32>
      %c0_33 = arith.constant 0 : index
      %c0_34 = arith.constant 0 : index
      %44 = vector.load %arg8[%c0_33, %c0_34] : memref<4x1xf32, #tpu.memory_space<vmem>>, vector<4x1xf32>
      %45 = vector.broadcast %44 : vector<4x1xf32> to vector<4x16xf32>
      %46 = arith.addf %43, %45 : vector<4x16xf32>
      %c0_35 = arith.constant 0 : index
      %c0_36 = arith.constant 0 : index
      %c0_37 = arith.constant 0 : index
      %47 = vector.load %arg6[%c0_35, %c0_36, %c0_37] : memref<1x4x16xf32, #tpu.memory_space<vmem>>, vector<1x4x16xf32>
      %48 = vector.shape_cast %47 : vector<1x4x16xf32> to vector<4x16xf32>
      %c0_38 = arith.constant 0 : index
      %c0_39 = arith.constant 0 : index
      %49 = vector.load %arg9[%c0_38, %c0_39] : memref<4x1xf32, #tpu.memory_space<vmem>>, vector<4x1xf32>
      %50 = vector.broadcast %49 : vector<4x1xf32> to vector<4x16xf32>
      %51 = arith.mulf %48, %50 : vector<4x16xf32>
      %52 = arith.addf %46, %51 : vector<4x16xf32>
      %c0_40 = arith.constant 0 : index
      %c0_41 = arith.constant 0 : index
      %c0_42 = arith.constant 0 : index
      %53 = vector.load %arg10[%c0_40, %c0_41, %c0_42] : memref<1x4x16xf32, #tpu.memory_space<vmem>>, vector<1x4x16xf32>
      %54 = vector.shape_cast %53 : vector<1x4x16xf32> to vector<4x16xf32>
      %55 = vector.shape_cast %52 : vector<4x16xf32> to vector<1x4x16xf32>
      tpu.vector_store %arg10[%c0_40, %c0_41, %c0_42], %55 {strides = array<i32>} : memref<1x4x16xf32, #tpu.memory_space<vmem>>, vector<1x4x16xf32>,
    } else {
    }
    return
  }
  func.func @transform_0(%arg0: i32, %arg1: i32, %arg2: i32) -> (i32, i32, i32) {
    %c0_i32 = arith.constant 0 : i32
    %c0_i32_0 = arith.constant 0 : i32
    return %arg0, %arg1, %c0_i32 : i32, i32, i32
  }
  func.func @transform_1(%arg0: i32, %arg1: i32, %arg2: i32) -> (i32, i32, i32) {
    %c0_i32 = arith.constant 0 : i32
    %c0_i32_0 = arith.constant 0 : i32
    return %arg0, %arg2, %c0_i32 : i32, i32, i32
  }
  func.func @transform_2(%arg0: i32, %arg1: i32, %arg2: i32) -> (i32, i32, i32) {
    %c0_i32 = arith.constant 0 : i32
    %c0_i32_0 = arith.constant 0 : i32
    return %arg0, %arg2, %c0_i32 : i32, i32, i32
  }
  func.func @transform_3(%arg0: i32, %arg1: i32, %arg2: i32) -> (i32, i32, i32) {
    %c0_i32 = arith.constant 0 : i32
    %c0_i32_0 = arith.constant 0 : i32
    return %arg0, %c0_i32, %arg1 : i32, i32, i32
  }
  func.func @transform_4(%arg0: i32, %arg1: i32, %arg2: i32) -> (i32, i32) {
    %c0_i32 = arith.constant 0 : i32
    %c0_i32_0 = arith.constant 0 : i32
    %c0_i32_1 = arith.constant 0 : i32
    return %c0_i32, %c0_i32_0 : i32, i32
  }
  func.func @transform_5(%arg0: i32, %arg1: i32, %arg2: i32) -> (i32, i32) {
    %c0_i32 = arith.constant 0 : i32
    %c0_i32_0 = arith.constant 0 : i32
    %c0_i32_1 = arith.constant 0 : i32
    return %c0_i32, %c0_i32_0 : i32, i32
  }
  func.func @transform_6(%arg0: i32, %arg1: i32, %arg2: i32) -> (i32, i32) {
    %c0_i32 = arith.constant 0 : i32
    %c0_i32_0 = arith.constant 0 : i32
    %c0_i32_1 = arith.constant 0 : i32
    return %c0_i32, %c0_i32_0 : i32, i32
  }
  func.func @transform_7(%arg0: i32, %arg1: i32, %arg2: i32) -> (i32, i32, i32) {
    %c0_i32 = arith.constant 0 : i32
    %c0_i32_0 = arith.constant 0 : i32
    return %arg0, %c0_i32, %arg1 : i32, i32, i32
  }
}

</mosaic_0001>

<llo_original>
// kernel: attention_block.3
$region0: #{attention_block.3}
  #allocation0 [shape = 'u32[]', space=smem, size = 0x4, offset = 0x4, fixed_abs, tag = 'smem constant byte address 0x4 - core index']
  #allocation1 [shape = 'u32[72,128]{1,0:T(1,128)}', space=vmem, size = 0x9000, scoped, tag = 'internal scratch']
  #allocation2 [shape = 'f32[16,1]{1,0:T(8,128)}', space=vmem, size = 0x2000, scoped, tag = 'scratch operand']
  #allocation3 [shape = 'f32[16,1]{1,0:T(8,128)}', space=vmem, size = 0x2000, scoped, tag = 'scratch operand']
  #allocation4 [shape = 'f32[16,4]{1,0:T(8,128)}', space=vmem, size = 0x2000, scoped, tag = 'scratch operand']
  %s0 = inlined_call_operand.vmem [shape: bf16[2,16,4], index: 0, kind: input, shape index: {}]
  %s1 = inlined_call_operand.vmem [shape: bf16[2,16,4], index: 1, kind: input, shape index: {}]
  %s2 = inlined_call_operand.vmem [shape: bf16[2,16,4], index: 2, kind: input, shape index: {}]
  %s3 = inlined_call_operand.vmem [shape: f32[2,4,16], index: 3, kind: input, shape index: {}]
  %s4 = inlined_call_operand.vmem [shape: bf16[4,4], index: 4, kind: input, shape index: {}]
  %s5 = inlined_call_operand.vmem [shape: f32[4,1], index: 5, kind: input, shape index: {}]
  %s6 = inlined_call_operand.vmem [shape: f32[4,1], index: 6, kind: input, shape index: {}]
  %s7 = inlined_call_operand.hbm [shape: f32[2,4,16], index: 7, kind: output, shape index: {}]
  %s8 = sld [smem:[#allocation0]]
  $region69: #{attention_block.3} parent=0
    _
  %s10 = ssub.s32 1, %s8
  %s11 = scalar_select 0, %s10, %s8
  $region1: #{attention_block.3} parent=0
    #allocation5 [shape = 'u8[4096]{0}', space=vmem, size = 0x1000, scoped, tag = 'output window, operand 0']
    #allocation6 [shape = 's32[2]{0}', space=sflag, size = 0x8, scoped, tag = 'scoped memory for attention_block.3']
    %12 = vsyncpa [#allocation6], 0
    %s13 = scalar_lea.sflag [#allocation6], 1
    %14 = vsyncpa %s13, 0
    loop: start=0, step=1, limit=4
    $region2: #{attention_block.3} parent=1 // loop_pre_header
      _
    $region3: #{attention_block.3} parent=1 // loop_header
      %s16 = sphi 0, %s20
      %p17 = scmp.ge.s32.totalorder %s16, 4
      %s23 = sphi 0, %s42
      %s24 = sphi 0, %s38
      %s25 = sphi 0, %s34
      %s26 = sphi 0, %s23
      %s27 = sphi 0, %s24
      %s28 = sphi 0, %s25
      %s29 = sphi 0, %s26
      %s30 = sphi 0, %s27
      %s31 = sphi 0, %s28
      %s47 = sphi 0, %s49
      %s50 = sphi 0, %s47
      %s51 = sphi 0, %s50
      %s67 = sphi 0, %s51
      %s75 = sphi 0, %s77
      %s78 = sphi 0, %s75
      %s79 = sphi 0, %s78
      %s95 = sphi 0, %s79
      %s103 = sphi 0, %s105
      %s106 = sphi 0, %s103
      %s107 = sphi 0, %s106
      %s123 = sphi 0, %s107
      %s131 = sphi 0, %s133
      %s134 = sphi 0, %s131
      %s135 = sphi 0, %s134
      %s151 = sphi 0, %s135
      %s155 = sphi 0, %s155
      %s157 = sphi 0, %s155
      %s158 = sphi 0, %s157
      %s172 = sphi 0, %s158
      %s176 = sphi 0, %s176
      %s178 = sphi 0, %s176
      %s179 = sphi 0, %s178
      %s193 = sphi 0, %s179
      %s197 = sphi 0, %s197
      %s199 = sphi 0, %s197
      %s200 = sphi 0, %s199
      %s214 = sphi 0, %s200
      %s222 = sphi 0, %s224
      %s225 = sphi 0, %s222
      %s226 = sphi 0, %s225
      %s242 = sphi 0, %s226
    $region4: #{attention_block.3} parent=1 // loop_header_branch
      %19 = sbr.rel (%p17) target = $region8
    $region5: #{attention_block.3} parent=1 // loop_body
      %s21 = ssub.s32 %s16, 1
      %s22 = ssub.s32 %s16, 2
      %s32 = sadd.s32 1, %s25
      %p33 = scmp.ge.s32.totalorder %s32, 1
      %s34 = scalar_select %p33, 0, %s32
      %s35 = sadd.s32 1, %s24
      %s36 = scalar_select %p33, %s35, %s24
      %p37 = scmp.ge.s32.totalorder %s36, 1
      %s38 = scalar_select %p37, 0, %s36
      %s39 = sadd.s32 1, %s23
      %s40 = scalar_select %p37, %s39, %s23
      %p41 = scmp.ge.s32.totalorder %s40, 2
      %s42 = scalar_select %p41, 0, %s40
      %s43 = ssub.s32 %s23, %s42
      %s44 = ssub.s32 %s24, %s38
      %s45 = sor.u32 %s43, %s44
      %p46 = scmp.eq.s32.totalorder %s45, 0
      %s48 = sadd.s32 %s47, 1
      %s49 = scalar_select %p46, %s47, %s48
      %p52 = pneg %p46
      %p53 = scmp.eq.s32.totalorder %s16, 1
      %p54 = por %p52, %p53
      %p55 = scmp.ne.s32.totalorder %s47, %s50
      %p56 = scmp.eq.s32.totalorder %s16, 0
      %p57 = por %p55, %p56
      %p58 = scmp.ne.s32.totalorder %s47, %s50
      %p59 = scmp.eq.s32.totalorder %s21, 1
      %p60 = por %p58, %p59
      %p61 = scmp.ne.s32.totalorder %s50, %s51
      %p62 = scmp.eq.s32.totalorder %s21, 0
      %p63 = por %p61, %p62
      %p64 = scmp.ne.s32.totalorder %s50, %s51
      %p65 = scmp.eq.s32.totalorder %s22, 1
      %p66 = por %p64, %p65
      %p68 = scmp.ne.s32.totalorder %s51, %s67
      %p69 = scmp.eq.s32.totalorder %s22, 0
      %p70 = por %p68, %p69
      %s71 = ssub.s32 %s23, %s42
      %s72 = ssub.s32 %s25, %s34
      %s73 = sor.u32 %s71, %s72
      %p74 = scmp.eq.s32.totalorder %s73, 0
      %s76 = sadd.s32 %s75, 1
      %s77 = scalar_select %p74, %s75, %s76
      %p80 = pneg %p74
      %p81 = scmp.eq.s32.totalorder %s16, 1
      %p82 = por %p80, %p81
      %p83 = scmp.ne.s32.totalorder %s75, %s78
      %p84 = scmp.eq.s32.totalorder %s16, 0
      %p85 = por %p83, %p84
      %p86 = scmp.ne.s32.totalorder %s75, %s78
      %p87 = scmp.eq.s32.totalorder %s21, 1
      %p88 = por %p86, %p87
      %p89 = scmp.ne.s32.totalorder %s78, %s79
      %p90 = scmp.eq.s32.totalorder %s21, 0
      %p91 = por %p89, %p90
      %p92 = scmp.ne.s32.totalorder %s78, %s79
      %p93 = scmp.eq.s32.totalorder %s22, 1
      %p94 = por %p92, %p93
      %p96 = scmp.ne.s32.totalorder %s79, %s95
      %p97 = scmp.eq.s32.totalorder %s22, 0
      %p98 = por %p96, %p97
      %s99 = ssub.s32 %s23, %s42
      %s100 = ssub.s32 %s25, %s34
      %s101 = sor.u32 %s99, %s100
      %p102 = scmp.eq.s32.totalorder %s101, 0
      %s104 = sadd.s32 %s103, 1
      %s105 = scalar_select %p102, %s103, %s104
      %p108 = pneg %p102
      %p109 = scmp.eq.s32.totalorder %s16, 1
      %p110 = por %p108, %p109
      %p111 = scmp.ne.s32.totalorder %s103, %s106
      %p112 = scmp.eq.s32.totalorder %s16, 0
      %p113 = por %p111, %p112
      %p114 = scmp.ne.s32.totalorder %s103, %s106
      %p115 = scmp.eq.s32.totalorder %s21, 1
      %p116 = por %p114, %p115
      %p117 = scmp.ne.s32.totalorder %s106, %s107
      %p118 = scmp.eq.s32.totalorder %s21, 0
      %p119 = por %p117, %p118
      %p120 = scmp.ne.s32.totalorder %s106, %s107
      %p121 = scmp.eq.s32.totalorder %s22, 1
      %p122 = por %p120, %p121
      %p124 = scmp.ne.s32.totalorder %s107, %s123
      %p125 = scmp.eq.s32.totalorder %s22, 0
      %p126 = por %p124, %p125
      %s127 = ssub.s32 %s23, %s42
      %s128 = ssub.s32 %s24, %s38
      %s129 = sor.u32 %s127, %s128
      %p130 = scmp.eq.s32.totalorder %s129, 0
      %s132 = sadd.s32 %s131, 1
      %s133 = scalar_select %p130, %s131, %s132
      %p136 = pneg %p130
      %p137 = scmp.eq.s32.totalorder %s16, 1
      %p138 = por %p136, %p137
      %p139 = scmp.ne.s32.totalorder %s131, %s134
      %p140 = scmp.eq.s32.totalorder %s16, 0
      %p141 = por %p139, %p140
      %p142 = scmp.ne.s32.totalorder %s131, %s134
      %p143 = scmp.eq.s32.totalorder %s21, 1
      %p144 = por %p142, %p143
      %p145 = scmp.ne.s32.totalorder %s134, %s135
      %p146 = scmp.eq.s32.totalorder %s21, 0
      %p147 = por %p145, %p146
      %p148 = scmp.ne.s32.totalorder %s134, %s135
      %p149 = scmp.eq.s32.totalorder %s22, 1
      %p150 = por %p148, %p149
      %p152 = scmp.ne.s32.totalorder %s135, %s151
      %p153 = scmp.eq.s32.totalorder %s22, 0
      %p154 = por %p152, %p153
      %s156 = sadd.s32 %s155, 1
      %p159 = scmp.eq.s32.totalorder %s16, 1
      %p160 = scmp.ne.s32.totalorder %s155, %s157
      %p161 = scmp.eq.s32.totalorder %s16, 0
      %p162 = por %p160, %p161
      %p163 = scmp.ne.s32.totalorder %s155, %s157
      %p164 = scmp.eq.s32.totalorder %s21, 1
      %p165 = por %p163, %p164
      %p166 = scmp.ne.s32.totalorder %s157, %s158
      %p167 = scmp.eq.s32.totalorder %s21, 0
      %p168 = por %p166, %p167
      %p169 = scmp.ne.s32.totalorder %s157, %s158
      %p170 = scmp.eq.s32.totalorder %s22, 1
      %p171 = por %p169, %p170
      %p173 = scmp.ne.s32.totalorder %s158, %s172
      %p174 = scmp.eq.s32.totalorder %s22, 0
      %p175 = por %p173, %p174
      %s177 = sadd.s32 %s176, 1
      %p180 = scmp.eq.s32.totalorder %s16, 1
      %p181 = scmp.ne.s32.totalorder %s176, %s178
      %p182 = scmp.eq.s32.totalorder %s16, 0
      %p183 = por %p181, %p182
      %p184 = scmp.ne.s32.totalorder %s176, %s178
      %p185 = scmp.eq.s32.totalorder %s21, 1
      %p186 = por %p184, %p185
      %p187 = scmp.ne.s32.totalorder %s178, %s179
      %p188 = scmp.eq.s32.totalorder %s21, 0
      %p189 = por %p187, %p188
      %p190 = scmp.ne.s32.totalorder %s178, %s179
      %p191 = scmp.eq.s32.totalorder %s22, 1
      %p192 = por %p190, %p191
      %p194 = scmp.ne.s32.totalorder %s179, %s193
      %p195 = scmp.eq.s32.totalorder %s22, 0
      %p196 = por %p194, %p195
      %s198 = sadd.s32 %s197, 1
      %p201 = scmp.eq.s32.totalorder %s16, 1
      %p202 = scmp.ne.s32.totalorder %s197, %s199
      %p203 = scmp.eq.s32.totalorder %s16, 0
      %p204 = por %p202, %p203
      %p205 = scmp.ne.s32.totalorder %s197, %s199
      %p206 = scmp.eq.s32.totalorder %s21, 1
      %p207 = por %p205, %p206
      %p208 = scmp.ne.s32.totalorder %s199, %s200
      %p209 = scmp.eq.s32.totalorder %s21, 0
      %p210 = por %p208, %p209
      %p211 = scmp.ne.s32.totalorder %s199, %s200
      %p212 = scmp.eq.s32.totalorder %s22, 1
      %p213 = por %p211, %p212
      %p215 = scmp.ne.s32.totalorder %s200, %s214
      %p216 = scmp.eq.s32.totalorder %s22, 0
      %p217 = por %p215, %p216
      %s218 = ssub.s32 %s23, %s42
      %s219 = ssub.s32 %s24, %s38
      %s220 = sor.u32 %s218, %s219
      %p221 = scmp.eq.s32.totalorder %s220, 0
      %s223 = sadd.s32 %s222, 1
      %s224 = scalar_select %p221, %s222, %s223
      %p227 = pneg %p221
      %p228 = scmp.eq.s32.totalorder %s16, 1
      %p229 = por %p227, %p228
      %p230 = scmp.ne.s32.totalorder %s222, %s225
      %p231 = scmp.eq.s32.totalorder %s16, 0
      %p232 = por %p230, %p231
      %p233 = scmp.ne.s32.totalorder %s222, %s225
      %p234 = scmp.eq.s32.totalorder %s21, 1
      %p235 = por %p233, %p234
      %p236 = scmp.ne.s32.totalorder %s225, %s226
      %p237 = scmp.eq.s32.totalorder %s21, 0
      %p238 = por %p236, %p237
      %p239 = scmp.ne.s32.totalorder %s225, %s226
      %p240 = scmp.eq.s32.totalorder %s22, 1
      %p241 = por %p239, %p240
      %p243 = scmp.ne.s32.totalorder %s226, %s242
      %p244 = scmp.eq.s32.totalorder %s22, 0
      %p245 = por %p243, %p244
      %p246 = scmp.le.s32.totalorder 1, %s16
      %p247 = scmp.lt.s32.totalorder %s16, 3
      %p248 = pnand %p246, %p247
      %p249 = pneg %p248
      // Predicated region
      $region9: #{attention_block.3} parent=5 // pred_check
        _
      $region10: #{attention_block.3} parent=5 // pred_check_branch
        %251 = sbr.rel (%p248) target = $region12
      $region11: #{attention_block.3} parent=5 // pred_region
        %s252 = ssub.s32 %s16, 1
        // Predicated region
        $region13: #{attention_block.3} parent=11 // pred_check
          %p253 = pneg %p168
        $region14: #{attention_block.3} parent=11 // pred_check_branch
          %255 = sbr.rel (%p253) target = $region16
        $region15: #{attention_block.3} parent=11 // pred_region
          _
        $region16: #{attention_block.3} parent=11 // pred_fallthru
          _
        // Predicated region
        $region17: #{attention_block.3} parent=11 // pred_check
          %p256 = pneg %p189
        $region18: #{attention_block.3} parent=11 // pred_check_branch
          %258 = sbr.rel (%p256) target = $region20
        $region19: #{attention_block.3} parent=11 // pred_region
          _
        $region20: #{attention_block.3} parent=11 // pred_fallthru
          _
        // Predicated region
        $region21: #{attention_block.3} parent=11 // pred_check
          %p259 = pneg %p210
        $region22: #{attention_block.3} parent=11 // pred_check_branch
          %261 = sbr.rel (%p259) target = $region24
        $region23: #{attention_block.3} parent=11 // pred_region
          _
        $region24: #{attention_block.3} parent=11 // pred_fallthru
          _
      $region12: #{attention_block.3} parent=5 // pred_fallthru
        _
      %p262 = scmp.lt.s32.totalorder %s16, 2
      // Predicated region
      $region25: #{attention_block.3} parent=5 // pred_check
        %p263 = pneg %p262
      $region26: #{attention_block.3} parent=5 // pred_check_branch
        %265 = sbr.rel (%p263) target = $region28
      $region27: #{attention_block.3} parent=5 // pred_region
        // Predicated region
        $region29: #{attention_block.3} parent=27 // pred_check
          %p266 = pneg %p57
        $region30: #{attention_block.3} parent=27 // pred_check_branch
          %268 = sbr.rel (%p266) target = $region32
        $region31: #{attention_block.3} parent=27 // pred_region
          %s269 = smul.u32 2, %s24
          %p270 = scmp.lt.s32.totalorder %s23, 1
          %s271 = scalar_select %p270, %s23, 1
          %p272 = scmp.lt.s32.totalorder %s269, 1
          %s273 = scalar_select %p272, %s269, 1
          %s274 = smul.addr %s271, 2
          %s275 = sadd.s32 %s273, %s274
          %s276 = smul.addr %s275, 4
          %s277 = scalar_lea.vmem %s0, %s276
          %s278 = smul.u32 2, %s24
        $region32: #{attention_block.3} parent=27 // pred_fallthru
          _
        // Predicated region
        $region33: #{attention_block.3} parent=27 // pred_check
          %p279 = pneg %p85
        $region34: #{attention_block.3} parent=27 // pred_check_branch
          %281 = sbr.rel (%p279) target = $region36
        $region35: #{attention_block.3} parent=27 // pred_region
          %s282 = smul.u32 2, %s25
          %p283 = scmp.lt.s32.totalorder %s23, 1
          %s284 = scalar_select %p283, %s23, 1
          %p285 = scmp.lt.s32.totalorder %s282, 1
          %s286 = scalar_select %p285, %s282, 1
          %s287 = smul.addr %s284, 2
          %s288 = sadd.s32 %s286, %s287
          %s289 = smul.addr %s288, 4
          %s290 = scalar_lea.vmem %s1, %s289
          %s291 = smul.u32 2, %s25
        $region36: #{attention_block.3} parent=27 // pred_fallthru
          _
        // Predicated region
        $region37: #{attention_block.3} parent=27 // pred_check
          %p292 = pneg %p113
        $region38: #{attention_block.3} parent=27 // pred_check_branch
          %294 = sbr.rel (%p292) target = $region40
        $region39: #{attention_block.3} parent=27 // pred_region
          %s295 = smul.u32 2, %s25
          %p296 = scmp.lt.s32.totalorder %s23, 1
          %s297 = scalar_select %p296, %s23, 1
          %p298 = scmp.lt.s32.totalorder %s295, 1
          %s299 = scalar_select %p298, %s295, 1
          %s300 = smul.addr %s297, 2
          %s301 = sadd.s32 %s299, %s300
          %s302 = smul.addr %s301, 4
          %s303 = scalar_lea.vmem %s2, %s302
          %s304 = smul.u32 2, %s25
        $region40: #{attention_block.3} parent=27 // pred_fallthru
          _
        // Predicated region
        $region41: #{attention_block.3} parent=27 // pred_check
          %p305 = pneg %p141
        $region42: #{attention_block.3} parent=27 // pred_check_branch
          %307 = sbr.rel (%p305) target = $region44
        $region43: #{attention_block.3} parent=27 // pred_region
          %p308 = scmp.lt.s32.totalorder %s23, 1
          %s309 = scalar_select %p308, %s23, 1
          %p310 = scmp.lt.s32.totalorder %s24, 0
          %s311 = scalar_select %p310, %s24, 0
          %s312 = sadd.s32 %s311, %s309
          %s313 = smul.addr %s312, 4
          %s314 = scalar_lea.vmem %s3, %s313
        $region44: #{attention_block.3} parent=27 // pred_fallthru
          _
      $region28: #{attention_block.3} parent=5 // pred_fallthru
        _
      %p315 = scmp.le.s32.totalorder 1, %s16
      %p316 = scmp.lt.s32.totalorder %s16, 3
      %p317 = pnand %p315, %p316
      %p318 = pneg %p317
      // Predicated region
      $region45: #{attention_block.3} parent=5 // pred_check
        _
      $region46: #{attention_block.3} parent=5 // pred_check_branch
        %320 = sbr.rel (%p317) target = $region48
      $region47: #{attention_block.3} parent=5 // pred_region
        %s321 = ssub.s32 %s16, 1
        %s322 = smul.u32 2, %s27
        %p323 = scmp.lt.s32.totalorder %s26, 1
        %s324 = scalar_select %p323, %s26, 1
        %p325 = scmp.lt.s32.totalorder %s322, 1
        %s326 = scalar_select %p325, %s322, 1
        %s327 = smul.addr %s324, 2
        %s328 = sadd.s32 %s326, %s327
        %s329 = smul.addr %s328, 4
        %s330 = scalar_lea.vmem %s0, %s329
        %p331 = pneg %p63
        %p332 = pneg %p60
        %s333 = smul.u32 2, %s28
        %p334 = scmp.lt.s32.totalorder %s26, 1
        %s335 = scalar_select %p334, %s26, 1
        %p336 = scmp.lt.s32.totalorder %s333, 1
        %s337 = scalar_select %p336, %s333, 1
        %s338 = smul.addr %s335, 2
        %s339 = sadd.s32 %s337, %s338
        %s340 = smul.addr %s339, 4
        %s341 = scalar_lea.vmem %s1, %s340
        %p342 = pneg %p91
        %p343 = pneg %p88
        %s344 = smul.u32 2, %s28
        %p345 = scmp.lt.s32.totalorder %s26, 1
        %s346 = scalar_select %p345, %s26, 1
        %p347 = scmp.lt.s32.totalorder %s344, 1
        %s348 = scalar_select %p347, %s344, 1
        %s349 = smul.addr %s346, 2
        %s350 = sadd.s32 %s348, %s349
        %s351 = smul.addr %s350, 4
        %s352 = scalar_lea.vmem %s2, %s351
        %p353 = pneg %p119
        %p354 = pneg %p116
        %p355 = scmp.lt.s32.totalorder %s26, 1
        %s356 = scalar_select %p355, %s26, 1
        %p357 = scmp.lt.s32.totalorder %s27, 0
        %s358 = scalar_select %p357, %s27, 0
        %s359 = sadd.s32 %s358, %s356
        %s360 = smul.addr %s359, 4
        %s361 = scalar_lea.vmem %s3, %s360
        %p362 = pneg %p147
        %p363 = pneg %p144
        %p364 = pneg %p168
        %p365 = pneg %p165
        %p366 = pneg %p189
        %p367 = pneg %p186
        %p368 = pneg %p210
        %p369 = pneg %p207
        %p370 = pneg %p238
        %p371 = pneg %p235
        %s372 = sand.u32 %s225, 1
        %s373 = scalar_lea.sflag [#allocation6], %s372
        %s374 = sand.u32 %s225, 1
        %s375 = smul.addr %s374, 4
        %s376 = scalar_lea.vmem [#allocation5], %s375
        %s377 = smul.u32 2, %s27
        %p378 = scmp.lt.s32.totalorder %s26, 1
        %s379 = scalar_select %p378, %s26, 1
        %p380 = scmp.lt.s32.totalorder %s377, 1
        %s381 = scalar_select %p380, %s377, 1
        %s382 = smul.addr %s379, 2
        %s383 = sadd.s32 %s381, %s382
        %s384 = smul.addr %s383, 4
        %s385 = scalar_lea.vmem %s0, %s384
        %s386 = smul.u32 2, %s27
        %s387 = smul.u32 2, %s28
        %p388 = scmp.lt.s32.totalorder %s26, 1
        %s389 = scalar_select %p388, %s26, 1
        %p390 = scmp.lt.s32.totalorder %s387, 1
        %s391 = scalar_select %p390, %s387, 1
        %s392 = smul.addr %s389, 2
        %s393 = sadd.s32 %s391, %s392
        %s394 = smul.addr %s393, 4
        %s395 = scalar_lea.vmem %s1, %s394
        %s396 = smul.u32 2, %s28
        %s397 = smul.u32 2, %s28
        %p398 = scmp.lt.s32.totalorder %s26, 1
        %s399 = scalar_select %p398, %s26, 1
        %p400 = scmp.lt.s32.totalorder %s397, 1
        %s401 = scalar_select %p400, %s397, 1
        %s402 = smul.addr %s399, 2
        %s403 = sadd.s32 %s401, %s402
        %s404 = smul.addr %s403, 4
        %s405 = scalar_lea.vmem %s2, %s404
        %s406 = smul.u32 2, %s28
        %p407 = scmp.lt.s32.totalorder %s26, 1
        %s408 = scalar_select %p407, %s26, 1
        %p409 = scmp.lt.s32.totalorder %s27, 0
        %s410 = scalar_select %p409, %s27, 0
        %s411 = sadd.s32 %s410, %s408
        %s412 = smul.addr %s411, 4
        %s413 = scalar_lea.vmem %s3, %s412
        %p415 = scmp.eq.s32.totalorder %s28, 0
        // Predicated region
        $region49: #{attention_block.3} parent=47 // pred_check
          %p416 = pneg %p415
        $region50: #{attention_block.3} parent=47 // pred_check_branch
          %418 = sbr.rel (%p416) target = $region52
        $region51: #{attention_block.3} parent=47 // pred_region
          %vm419 = vcmask 7168
          %420 = vst.msk [vmem:[#allocation2] sm:$0xff] %vm419, -inf
          %421 = vst.msk [vmem:[#allocation2 + $0x8] sm:$0xff] %vm419, -inf
          %422 = vst.msk [vmem:[#allocation3] sm:$0xff] %vm419, 0.0
          %423 = vst.msk [vmem:[#allocation3 + $0x8] sm:$0xff] %vm419, 0.0
          %vm424 = vcmask 31744
          %425 = vst.msk [vmem:[#allocation4] sm:$0xff] %vm424, 0.0
          %426 = vst.msk [vmem:[#allocation4 + $0x8] sm:$0xff] %vm424, 0.0
        $region52: #{attention_block.3} parent=47 // pred_fallthru
          _
        %v427 = vld [vmem:[%s385] sm:$0xf]
        %v428 = vld [vmem:[%s385 + $0x4] sm:$0xf]
        %v429 = vld [vmem:[%s395] sm:$0xf]
        %v430 = vld [vmem:[%s395 + $0x4] sm:$0xf]
        %v431 = vld [vmem:[%s405] sm:$0xf]
        %v432 = vld [vmem:[%s405 + $0x4] sm:$0xf]
        %v435 = vunpack.c.l.b16 %v427
        %v436 = vunpack.c.l.b16 %v428
        %v437 = vpack.c.b16 %v436, %v435
        %v440 = vunpack.c.l.b16 %v429
        %v441 = vunpack.c.l.b16 %v430
        %v442 = vpack.c.b16 %v441, %v440
        %vm443 = vcmask 31744
        %v445 = vsel %vm443, %v437, 0
        %v448 = vsel %vm443, %v442, 0
        %450 = vmatpush.bf16.xpose.msra.mxu0 0
        %451 = vmatpush.bf16.xpose.msra.mxu0 0
        %452 = vmatpush.bf16.xpose.msra.mxu0 0
        %453 = vmatpush.bf16.xpose.msra.mxu0 0
        %454 = vmatpush.bf16.xpose.msra.mxu0 0
        %455 = vmatpush.bf16.xpose.msra.mxu0 0
        %456 = vmatpush.bf16.xpose.msra.mxu0 0
        %457 = vmatpush.bf16.xpose.msra.mxu0 %v448
        %458 = vmatmul.bf16.gmra.mxu0 %v445
        %v459 = vpop.f32.mrf.mxu0
        %v460 = vadd.f32 0.0, %v459
        %v461 = vpop.f32.mrf.mxu0
        %v462 = vadd.f32 0.0, %v461
        %463 = vdwg.mxu0
        %v464 = vld [vmem:[#allocation2] sm:$0xff]
        %v465 = vld [vmem:[#allocation2 + $0x8] sm:$0xff]
        %vm466 = vcmask 130048
        %v467 = vsel %vm466, %v460, -inf
        %468 = vmax.xlane.f32.xlu0 %v467
        %v469 = vpop.xlane.xlu0 %468
        %v470 = vsel %vm466, %v462, -inf
        %471 = vmax.xlane.f32.xlu0 %v470
        %v472 = vpop.xlane.xlu0 %471
        %v473 = vmax.f32 %v464, %v469
        %v474 = vmax.f32 %v465, %v472
        %v475 = vsub.f32 %v464, %v473
        %v476 = vsub.f32 %v465, %v474
        %v477 = vmul.f32 %v475, 1.442695
        %v478 = vpow.pop %v477
        %v479 = vmul.f32 %v476, 1.442695
        %v480 = vpow.pop %v479
        %482 = vset.pattern.permute.xlu0 0
        %483 = vperm.xlu0 %482, %v473
        %v484 = vpop.permute.xlu0 %483
        %487 = vset.pattern.permute.xlu0 0
        %488 = vperm.xlu0 %487, %v474
        %v489 = vpop.permute.xlu0 %488
        %v491 = vsub.f32 %v460, %v484
        %v492 = vsub.f32 %v462, %v489
        %v493 = vmul.f32 %v491, 1.442695
        %v494 = vpow.pop %v493
        %v495 = vmul.f32 %v492, 1.442695
        %v496 = vpow.pop %v495
        %v497 = vld [vmem:[#allocation3] sm:$0xff]
        %v498 = vld [vmem:[#allocation3 + $0x8] sm:$0xff]
        %v499 = vmul.f32 %v478, %v497
        %v500 = vmul.f32 %v480, %v498
        %v501 = vsel %vm466, %v494, 0.0
        %502 = vadd.xlane.f32.xlu0 %v501
        %v503 = vpop.xlane.xlu0 %502
        %v504 = vsel %vm466, %v496, 0.0
        %505 = vadd.xlane.f32.xlu0 %v504
        %v506 = vpop.xlane.xlu0 %505
        %v507 = vadd.f32 %v499, %v503
        %v508 = vadd.f32 %v500, %v506
        %vm509 = vcmask 7168
        %510 = vst.msk [vmem:[#allocation3] sm:$0xff] %vm509, %v507
        %511 = vst.msk [vmem:[#allocation3 + $0x8] sm:$0xff] %vm509, %v508
        %v512 = vld [vmem:[#allocation4] sm:$0xff]
        %v513 = vld [vmem:[#allocation4 + $0x8] sm:$0xff]
        %515 = vset.pattern.permute.xlu0 0
        %516 = vperm.xlu0 %515, %v478
        %v517 = vpop.permute.xlu0 %516
        %520 = vset.pattern.permute.xlu0 0
        %521 = vperm.xlu0 %520, %v480
        %v522 = vpop.permute.xlu0 %521
        %v524 = vmul.f32 %v517, %v512
        %v525 = vmul.f32 %v522, %v513
        %v526 = vpack.c.bf16 %v496, %v494
        %v529 = vunpack.c.l.b16 %v431
        %v530 = vunpack.c.l.b16 %v432
        %v531 = vpack.c.b16 %v530, %v529
        %v534 = vsel %vm466, %v526, 0
        %536 = vmatpush.bf16.msra.mxu0 0
        %537 = vmatpush.bf16.msra.mxu0 0
        %538 = vmatpush.bf16.msra.mxu0 0
        %539 = vmatpush.bf16.msra.mxu0 0
        %540 = vmatpush.bf16.msra.mxu0 0
        %541 = vmatpush.bf16.msra.mxu0 0
        %542 = vmatpush.bf16.msra.mxu0 0
        %543 = vmatpush.bf16.msra.mxu0 %v531
        %544 = vmatmul.bf16.gmra.mxu0 %v534
        %v545 = vpop.f32.mrf.mxu0
        %v546 = vadd.f32 0.0, %v545
        %v547 = vpop.f32.mrf.mxu0
        %v548 = vadd.f32 0.0, %v547
        %549 = vdwg.mxu0
        %v550 = vadd.f32 %v524, %v546
        %v551 = vadd.f32 %v525, %v548
        %552 = vst.msk [vmem:[#allocation4] sm:$0xff] %vm443, %v550
        %553 = vst.msk [vmem:[#allocation4 + $0x8] sm:$0xff] %vm443, %v551
        %554 = vst.msk [vmem:[#allocation2] sm:$0xff] %vm509, %v473
        %555 = vst.msk [vmem:[#allocation2 + $0x8] sm:$0xff] %vm509, %v474
        // Predicated region
        $region53: #{attention_block.3} parent=47 // pred_check
          %p556 = pneg %p415
        $region54: #{attention_block.3} parent=47 // pred_check_branch
          %558 = sbr.rel (%p556) target = $region56
        $region55: #{attention_block.3} parent=47 // pred_region
          %v559 = vld [vmem:[#allocation3] sm:$0xff]
          %v560 = vld [vmem:[#allocation3 + $0x8] sm:$0xff]
          %v561 = vrcp.pop %v559
          %v562 = vrcp.pop %v560
          %v563 = vld [vmem:[#allocation4] sm:$0xff]
          %v564 = vld [vmem:[#allocation4 + $0x8] sm:$0xff]
          %566 = vset.pattern.permute.xlu0 0
          %567 = vperm.xlu0 %566, %v561
          %v568 = vpop.permute.xlu0 %567
          %571 = vset.pattern.permute.xlu0 0
          %572 = vperm.xlu0 %571, %v562
          %v573 = vpop.permute.xlu0 %572
          %v575 = vmul.f32 %v563, %v568
          %v576 = vmul.f32 %v564, %v573
          %v577 = vpack.c.bf16 %v576, %v575
          %v578 = vld [vmem:[%s4] sm:$0x3]
          %v579 = vld [vmem:[%s5] sm:$0xf]
          %581 = vset.pattern.permute.xlu0 0
          %582 = vperm.xlu0 %581, %v579
          %v583 = vpop.permute.xlu0 %582
          %v586 = vsel %vm443, %v578, 0
          %v589 = vsel %vm443, %v577, 0
          %591 = vmatpush.bf16.xpose.msra.mxu0 0
          %592 = vmatpush.bf16.xpose.msra.mxu0 0
          %593 = vmatpush.bf16.xpose.msra.mxu0 0
          %594 = vmatpush.bf16.xpose.msra.mxu0 0
          %595 = vmatpush.bf16.xpose.msra.mxu0 0
          %596 = vmatpush.bf16.xpose.msra.mxu0 0
          %597 = vmatpush.bf16.xpose.msra.mxu0 0
          %598 = vmatpush.bf16.xpose.msra.mxu0 %v589
          %599 = vmatmul.bf16.gmra.mxu0 %v586
          %v600 = vpop.f32.mrf.mxu0
          %v601 = vadd.f32 %v583, %v600
          %v602 = vpop.f32.mrf.mxu0
          %603 = vdwg.mxu0
          %v604 = vld [vmem:[%s413] sm:$0xf]
          %v605 = vld [vmem:[%s6] sm:$0xf]
          %607 = vset.pattern.permute.xlu0 0
          %608 = vperm.xlu0 %607, %v605
          %v609 = vpop.permute.xlu0 %608
          %v611 = vmul.f32 %v604, %v609
          %v612 = vadd.f32 %v601, %v611
          %vm613 = vcmask 125952
          %614 = vst.msk [vmem:[%s376] sm:$0xf] %vm613, %v612
        $region56: #{attention_block.3} parent=47 // pred_fallthru
          _
        %s615 = sand.u32 %s225, 1
        %s616 = scalar_lea.sflag [#allocation6], %s615
        %s617 = sand.u32 %s225, 1
        %s618 = smul.addr %s617, 4
        %s619 = scalar_lea.vmem [#allocation5], %s618
        // Predicated region
        $region57: #{attention_block.3} parent=47 // pred_check
          %p620 = pneg %p235
        $region58: #{attention_block.3} parent=47 // pred_check_branch
          %622 = sbr.rel (%p620) target = $region60
        $region59: #{attention_block.3} parent=47 // pred_region
          %624 = vsyncadd %s616, 0
          %s625 = sadd.s32 %s27, %s26
          %s626 = smul.addr %s625, 4
          %s627 = scalar_lea.hbm %s7, %s626
          %s629 = sshll.u32 %s619, 4
          %s630 = int_to_ptr.vmem [resolvable:$true] %s629
          %s631 = sshll.u32 %s627, 4
          %s632 = int_to_ptr.hbm [resolvable:$true] %s631
          %634 = dma.vmem_to_hbm [thread:$0]  %s630, 64, %s632, %s616
        $region60: #{attention_block.3} parent=47 // pred_fallthru
          _
      $region48: #{attention_block.3} parent=5 // pred_fallthru
        _
      %p635 = scmp.le.s32.totalorder 2, %s16
      // Predicated region
      $region61: #{attention_block.3} parent=5 // pred_check
        %p636 = pneg %p635
      $region62: #{attention_block.3} parent=5 // pred_check_branch
        %638 = sbr.rel (%p636) target = $region64
      $region63: #{attention_block.3} parent=5 // pred_region
        %s639 = ssub.s32 %s16, 2
        // Predicated region
        $region65: #{attention_block.3} parent=63 // pred_check
          %p640 = pneg %p241
        $region66: #{attention_block.3} parent=63 // pred_check_branch
          %642 = sbr.rel (%p640) target = $region68
        $region67: #{attention_block.3} parent=63 // pred_region
          %s643 = sand.u32 %s226, 1
          %s644 = scalar_lea.sflag [#allocation6], %s643
          %s645 = sand.u32 %s226, 1
          %s646 = smul.addr %s645, 4
          %s647 = scalar_lea.vmem [#allocation5], %s646
          %649 = dma.done %s644, 64
        $region68: #{attention_block.3} parent=63 // pred_fallthru
          _
      $region64: #{attention_block.3} parent=5 // pred_fallthru
        _
    $region6: #{attention_block.3} parent=1 // loop_footer
      %s20 = sadd.s32 1, %s16
    $region7: #{attention_block.3} parent=1 // loop_footer_branch
      %15 = sbr.rel target = $region3
    $region8: #{attention_block.3} parent=1 // loop_exit
      _
    %650 = vsyncpa [#allocation6], 1
    %s651 = scalar_lea.sflag [#allocation6], 1
    %652 = vsyncpa %s651, 1

// kernel: attention_block.2
$region0: #{attention_block.2}
  #allocation0 [shape = 'u32[]', space=smem, size = 0x4, offset = 0x4, fixed_abs, tag = 'smem constant byte address 0x4 - core index']
  #allocation1 [shape = 'u32[72,128]{1,0:T(1,128)}', space=vmem, size = 0x9000, scoped, tag = 'internal scratch']
  %s0 = inlined_call_operand.vmem [shape: bf16[32,4], index: 0, kind: input, shape index: {}]
  %s1 = inlined_call_operand.vmem [shape: bf16[4,4], index: 1, kind: input, shape index: {}]
  %s2 = inlined_call_operand.vmem [shape: bf16[4,4], index: 2, kind: input, shape index: {}]
  %s3 = inlined_call_operand.vmem [shape: bf16[4,4], index: 3, kind: input, shape index: {}]
  %s4 = inlined_call_operand.vmem [shape: f32[1,4], index: 4, kind: input, shape index: {}]
  %s5 = inlined_call_operand.vmem [shape: f32[1,4], index: 5, kind: input, shape index: {}]
  %s6 = inlined_call_operand.vmem [shape: f32[1,4], index: 6, kind: input, shape index: {}]
  %s7 = inlined_call_operand.vmem [shape: bf16[32,4], index: 7, kind: output, shape index: {0}]
  %s8 = inlined_call_operand.vmem [shape: bf16[32,4], index: 8, kind: output, shape index: {1}]
  %s9 = inlined_call_operand.vmem [shape: bf16[32,4], index: 9, kind: output, shape index: {2}]
  %10 = xla_tuple %s7, %s8, %s9
  %s11 = sld [smem:[#allocation0]]
  $region54: #{attention_block.2} parent=0
    _
  %s13 = ssub.s32 1, %s11
  %s14 = scalar_select 0, %s13, %s11
  // Predicated region
  $region2: #{attention_block.2} parent=0 // pred_check
    _
  $region3: #{attention_block.2} parent=0 // pred_check_branch
    %16 = sbr.rel (0) target = $region5
  $region4: #{attention_block.2} parent=0 // pred_region
    _
  $region5: #{attention_block.2} parent=0 // pred_fallthru
    _
  // Predicated region
  $region6: #{attention_block.2} parent=0 // pred_check
    _
  $region7: #{attention_block.2} parent=0 // pred_check_branch
    %18 = sbr.rel (0) target = $region9
  $region8: #{attention_block.2} parent=0 // pred_region
    _
  $region9: #{attention_block.2} parent=0 // pred_fallthru
    _
  // Predicated region
  $region10: #{attention_block.2} parent=0 // pred_check
    _
  $region11: #{attention_block.2} parent=0 // pred_check_branch
    %20 = sbr.rel (0) target = $region13
  $region12: #{attention_block.2} parent=0 // pred_region
    _
  $region13: #{attention_block.2} parent=0 // pred_fallthru
    _
  // Predicated region
  $region14: #{attention_block.2} parent=0 // pred_check
    _
  $region15: #{attention_block.2} parent=0 // pred_check_branch
    %22 = sbr.rel (0) target = $region17
  $region16: #{attention_block.2} parent=0 // pred_region
    _
  $region17: #{attention_block.2} parent=0 // pred_fallthru
    _
  // Predicated region
  $region18: #{attention_block.2} parent=0 // pred_check
    _
  $region19: #{attention_block.2} parent=0 // pred_check_branch
    %24 = sbr.rel (0) target = $region21
  $region20: #{attention_block.2} parent=0 // pred_region
    _
  $region21: #{attention_block.2} parent=0 // pred_fallthru
    _
  // Predicated region
  $region22: #{attention_block.2} parent=0 // pred_check
    _
  $region23: #{attention_block.2} parent=0 // pred_check_branch
    %26 = sbr.rel (0) target = $region25
  $region24: #{attention_block.2} parent=0 // pred_region
    _
  $region25: #{attention_block.2} parent=0 // pred_fallthru
    _
  // Predicated region
  $region26: #{attention_block.2} parent=0 // pred_check
    _
  $region27: #{attention_block.2} parent=0 // pred_check_branch
    %28 = sbr.rel (0) target = $region29
  $region28: #{attention_block.2} parent=0 // pred_region
    _
  $region29: #{attention_block.2} parent=0 // pred_fallthru
    _
  %v30 = vld [vmem:[%s0] sm:$0xf]
  %v31 = vld [vmem:[%s0 + $0x4] sm:$0xf]
  %v32 = vld [vmem:[%s0 + $0x8] sm:$0xf]
  %v33 = vld [vmem:[%s0 + $0xc] sm:$0xf]
  %v34 = vld [vmem:[%s1] sm:$0x3]
  %v35 = vld [vmem:[%s4] sm:$0x1]
  %v37 = vperm.slane %v35, 0
  %v43 = vunpack.c.l.b16 %v30
  %v44 = vunpack.c.l.b16 %v31
  %v45 = vunpack.c.l.b16 %v32
  %v46 = vunpack.c.l.b16 %v33
  %v47 = vpack.c.b16 %v44, %v43
  %v48 = vpack.c.b16 %v46, %v45
  %vm49 = vcmask 31744
  %v51 = vsel %vm49, %v47, 0
  %v54 = vsel %vm49, %v48, 0
  %vm56 = vcmask 1041408
  %v58 = vsel %vm56, %v34, 0
  %60 = vmatpush.bf16.msra.mxu0 0
  %61 = vmatpush.bf16.msra.mxu0 0
  %62 = vmatpush.bf16.msra.mxu0 0
  %63 = vmatpush.bf16.msra.mxu0 0
  %64 = vmatpush.bf16.msra.mxu0 0
  %65 = vmatpush.bf16.msra.mxu0 0
  %66 = vmatpush.bf16.msra.mxu0 0
  %67 = vmatpush.bf16.msra.mxu0 %v58
  %68 = vmatmul.bf16.gmra.mxu0 %v51
  %v69 = vpop.f32.mrf.mxu0
  %v70 = vadd.f32 %v37, %v69
  %v71 = vpop.f32.mrf.mxu0
  %v72 = vadd.f32 %v37, %v71
  %73 = vmatmul.bf16.gmra.mxu0 %v54
  %v74 = vpop.f32.mrf.mxu0
  %v75 = vadd.f32 %v37, %v74
  %v76 = vpop.f32.mrf.mxu0
  %v77 = vadd.f32 %v37, %v76
  %78 = vdwg.mxu0
  %v79 = vpack.c.bf16 %v70, %v70
  %v80 = vpack.c.bf16 %v72, %v72
  %v81 = vpack.c.bf16 %v75, %v75
  %v82 = vpack.c.bf16 %v77, %v77
  %vm83 = vcmask 27648
  %84 = vst.msk [vmem:[%s7] sm:$0xf] %vm83, %v79
  %85 = vst.msk [vmem:[%s7 + $0x4] sm:$0xf] %vm83, %v80
  %86 = vst.msk [vmem:[%s7 + $0x8] sm:$0xf] %vm83, %v81
  %87 = vst.msk [vmem:[%s7 + $0xc] sm:$0xf] %vm83, %v82
  %v88 = vld [vmem:[%s2] sm:$0x3]
  %v89 = vld [vmem:[%s5] sm:$0x1]
  %v91 = vperm.slane %v89, 0
  %v94 = vsel %vm56, %v88, 0
  %96 = vmatpush.bf16.msra.mxu0 0
  %97 = vmatpush.bf16.msra.mxu0 0
  %98 = vmatpush.bf16.msra.mxu0 0
  %99 = vmatpush.bf16.msra.mxu0 0
  %100 = vmatpush.bf16.msra.mxu0 0
  %101 = vmatpush.bf16.msra.mxu0 0
  %102 = vmatpush.bf16.msra.mxu0 0
  %103 = vmatpush.bf16.msra.mxu0 %v94
  %104 = vmatmul.bf16.gmra.mxu0 %v51
  %v105 = vpop.f32.mrf.mxu0
  %v106 = vadd.f32 %v91, %v105
  %v107 = vpop.f32.mrf.mxu0
  %v108 = vadd.f32 %v91, %v107
  %109 = vmatmul.bf16.gmra.mxu0 %v54
  %v110 = vpop.f32.mrf.mxu0
  %v111 = vadd.f32 %v91, %v110
  %v112 = vpop.f32.mrf.mxu0
  %v113 = vadd.f32 %v91, %v112
  %114 = vdwg.mxu0
  %v115 = vpack.c.bf16 %v106, %v106
  %v116 = vpack.c.bf16 %v108, %v108
  %v117 = vpack.c.bf16 %v111, %v111
  %v118 = vpack.c.bf16 %v113, %v113
  %119 = vst.msk [vmem:[%s8] sm:$0xf] %vm83, %v115
  %120 = vst.msk [vmem:[%s8 + $0x4] sm:$0xf] %vm83, %v116
  %121 = vst.msk [vmem:[%s8 + $0x8] sm:$0xf] %vm83, %v117
  %122 = vst.msk [vmem:[%s8 + $0xc] sm:$0xf] %vm83, %v118
  %v123 = vld [vmem:[%s3] sm:$0x3]
  %v124 = vld [vmem:[%s6] sm:$0x1]
  %v126 = vperm.slane %v124, 0
  %v129 = vsel %vm56, %v123, 0
  %131 = vmatpush.bf16.msra.mxu0 0
  %132 = vmatpush.bf16.msra.mxu0 0
  %133 = vmatpush.bf16.msra.mxu0 0
  %134 = vmatpush.bf16.msra.mxu0 0
  %135 = vmatpush.bf16.msra.mxu0 0
  %136 = vmatpush.bf16.msra.mxu0 0
  %137 = vmatpush.bf16.msra.mxu0 0
  %138 = vmatpush.bf16.msra.mxu0 %v129
  %139 = vmatmul.bf16.gmra.mxu0 %v51
  %v140 = vpop.f32.mrf.mxu0
  %v141 = vadd.f32 %v126, %v140
  %v142 = vpop.f32.mrf.mxu0
  %v143 = vadd.f32 %v126, %v142
  %144 = vmatmul.bf16.gmra.mxu0 %v54
  %v145 = vpop.f32.mrf.mxu0
  %v146 = vadd.f32 %v126, %v145
  %v147 = vpop.f32.mrf.mxu0
  %v148 = vadd.f32 %v126, %v147
  %149 = vdwg.mxu0
  %v150 = vpack.c.bf16 %v141, %v141
  %v151 = vpack.c.bf16 %v143, %v143
  %v152 = vpack.c.bf16 %v146, %v146
  %v153 = vpack.c.bf16 %v148, %v148
  %154 = vst.msk [vmem:[%s9] sm:$0xf] %vm83, %v150
  %155 = vst.msk [vmem:[%s9 + $0x4] sm:$0xf] %vm83, %v151
  %156 = vst.msk [vmem:[%s9 + $0x8] sm:$0xf] %vm83, %v152
  %157 = vst.msk [vmem:[%s9 + $0xc] sm:$0xf] %vm83, %v153
  // Predicated region
  $region30: #{attention_block.2} parent=0 // pred_check
    _
  $region31: #{attention_block.2} parent=0 // pred_check_branch
    %159 = sbr.rel (0) target = $region33
  $region32: #{attention_block.2} parent=0 // pred_region
    _
  $region33: #{attention_block.2} parent=0 // pred_fallthru
    _
  // Predicated region
  $region34: #{attention_block.2} parent=0 // pred_check
    _
  $region35: #{attention_block.2} parent=0 // pred_check_branch
    %161 = sbr.rel (0) target = $region37
  $region36: #{attention_block.2} parent=0 // pred_region
    _
  $region37: #{attention_block.2} parent=0 // pred_fallthru
    _
  // Predicated region
  $region38: #{attention_block.2} parent=0 // pred_check
    _
  $region39: #{attention_block.2} parent=0 // pred_check_branch
    %163 = sbr.rel (0) target = $region41
  $region40: #{attention_block.2} parent=0 // pred_region
    _
  $region41: #{attention_block.2} parent=0 // pred_fallthru
    _
  // Predicated region
  $region42: #{attention_block.2} parent=0 // pred_check
    _
  $region43: #{attention_block.2} parent=0 // pred_check_branch
    %165 = sbr.rel (0) target = $region45
  $region44: #{attention_block.2} parent=0 // pred_region
    _
  $region45: #{attention_block.2} parent=0 // pred_fallthru
    _
  // Predicated region
  $region46: #{attention_block.2} parent=0 // pred_check
    _
  $region47: #{attention_block.2} parent=0 // pred_check_branch
    %167 = sbr.rel (0) target = $region49
  $region48: #{attention_block.2} parent=0 // pred_region
    _
  $region49: #{attention_block.2} parent=0 // pred_fallthru
    _
  // Predicated region
  $region50: #{attention_block.2} parent=0 // pred_check
    _
  $region51: #{attention_block.2} parent=0 // pred_check_branch
    %169 = sbr.rel (0) target = $region53
  $region52: #{attention_block.2} parent=0 // pred_region
    _
  $region53: #{attention_block.2} parent=0 // pred_fallthru
    _

</llo_original>
